<compile_context>
chip_gen: v6e
topology: v6e:2x2x1
jax: 0.10.0
libtpu: 0.0.40
codegen_flags: <defaults>
</compile_context>

<pallas_src>
import jax
import jax.numpy as jnp
from jax.experimental import pallas as pl
from jax.experimental.pallas import tpu as pltpu


def actor_kernel(x_ref, w1_ref, b1_ref, g_ref, bta_ref,
                 w2_ref, b2_ref, w3_ref, b3_ref, o_ref):
    x = x_ref[...].astype(jnp.float32)

    # fc1: [B, n_state] @ [n_state, Fp] + [1, Fp]
    h1 = jnp.dot(x, w1_ref[...], preferred_element_type=jnp.float32) + b1_ref[...]

    # BatchNorm1d (training mode), single pass over h1:
    # two independent cross-sublane reductions (sum, sum of squares), then
    # gamma/beta folded into one scale/shift so normalization is a single FMA.
    inv_b = jnp.float32(1.0 / h1.shape[0])
    s1 = jnp.sum(h1, axis=0, keepdims=True)
    s2 = jnp.sum(h1 * h1, axis=0, keepdims=True)
    mu = s1 * inv_b
    var = s2 * inv_b - mu * mu
    scale = jax.lax.rsqrt(var + 1e-5) * g_ref[...]   # rsqrt -> EUP slot
    shift = bta_ref[...] - mu * scale
    h1n = h1 * scale + shift

    # LeakyReLU(0.2): mul + max, no compare/select.
    a1 = jnp.maximum(h1n, 0.2 * h1n)

    # fc2: [B, Fp] @ [Fp, F2p] + [1, F2p], LeakyReLU(0.2)
    h2 = jnp.dot(a1, w2_ref[...], preferred_element_type=jnp.float32) + b2_ref[...]
    a2 = jnp.maximum(h2, 0.2 * h2)

    # fc3 (lane-padded output): [B, F2p] @ [F2p, Ap] + [1, Ap], tanh
    h3 = jnp.dot(a2, w3_ref[...], preferred_element_type=jnp.float32) + b3_ref[...]
    o_ref[...] = jnp.tanh(h3).astype(o_ref.dtype)


def _round_up(n, m=128):
    return max(m, ((n + m - 1) // m) * m)


def pad_params(params):
    """Zero-pad every feature dim to a multiple of 128 lanes. Run ONCE at init.

    Padded lanes carry gamma=0, beta=0, bias=0 and zero weight columns/rows,
    so the padded activations stay identically zero through the whole network
    and the math on the real lanes is unchanged.
    """
    w1, b1 = params["w1"], params["b1"]
    gamma, beta = params["gamma"], params["beta"]
    w2, b2 = params["w2"], params["b2"]
    w3, b3 = params["w3"], params["b3"]

    n_state, F = w1.shape
    F2 = w2.shape[1]
    A = w3.shape[1]
    Fp, F2p, Ap = _round_up(F), _round_up(F2), _round_up(A)

    def pad2(a, r, c):
        return jnp.zeros((r, c), a.dtype).at[:a.shape[0], :a.shape[1]].set(a)

    return {
        "w1": pad2(w1, n_state, Fp), "b1": pad2(b1, 1, Fp),
        "gamma": pad2(gamma, 1, Fp), "beta": pad2(beta, 1, Fp),
        "w2": pad2(w2, Fp, F2p),     "b2": pad2(b2, 1, F2p),
        "w3": pad2(w3, F2p, Ap),     "b3": pad2(b3, 1, Ap),
        "n_action": A,
    }


def actor_forward(state, padded_params):
    """state: [B, n_state] float32. padded_params: output of pad_params()."""
    p = padded_params
    B = state.shape[0]
    n_action = p["n_action"]
    n_pad = p["w3"].shape[1]

    vmem = pl.BlockSpec(memory_space=pltpu.MemorySpace.VMEM)

    out_padded = pl.pallas_call(
        actor_kernel,
        out_shape=jax.ShapeDtypeStruct((B, n_pad), jnp.float32),
        in_specs=[vmem] * 9,
        out_specs=vmem,
        # Total VMEM footprint well under 1 MB: no grid, no tiling, no vmem
        # limit tuning needed on any TPU generation (v5e / v6e / v7x).
    )(state, p["w1"], p["b1"], p["gamma"], p["beta"],
      p["w2"], p["b2"], p["w3"], p["b3"])

    return out_padded[:, :n_action]


def init_params(key, n_state, n_action, fc_units):
    """Deterministic synthetic init. Linear weights stored transposed [in, out]."""
    ks = jax.random.split(key, 6)
    f2 = fc_units * 2

    def lin(kw, kb, fan_in, fan_out):
        bound = 1.0 / jnp.sqrt(fan_in)
        w = jax.random.uniform(kw, (fan_in, fan_out), jnp.float32, -bound, bound)
        b = jax.random.uniform(kb, (1, fan_out), jnp.float32, -bound, bound)
        return w, b

    w1, b1 = lin(ks[0], ks[1], n_state, fc_units)
    w2, b2 = lin(ks[2], ks[3], fc_units, f2)
    w3, b3 = lin(ks[4], ks[5], f2, n_action)
    gamma = jnp.ones((1, fc_units), jnp.float32)   # BatchNorm affine weight
    beta = jnp.zeros((1, fc_units), jnp.float32)   # BatchNorm affine bias
    return {"w1": w1, "b1": b1, "gamma": gamma, "beta": beta,
            "w2": w2, "b2": b2, "w3": w3, "b3": b3}


def reference_forward(state, p):
    """Pure-JAX reference of the PyTorch forward (training-mode BatchNorm)."""
    h1 = state @ p["w1"] + p["b1"]
    mu = jnp.mean(h1, axis=0, keepdims=True)
    var = jnp.mean((h1 - mu) ** 2, axis=0, keepdims=True)
    h1n = (h1 - mu) / jnp.sqrt(var + 1e-5) * p["gamma"] + p["beta"]
    a1 = jnp.where(h1n >= 0, h1n, 0.2 * h1n)
    h2 = a1 @ p["w2"] + p["b2"]
    a2 = jnp.where(h2 >= 0, h2, 0.2 * h2)
    return jnp.tanh(a2 @ p["w3"] + p["b3"])


if __name__ == "__main__":
    # Small shapes consistent with the module: Actor(n_state=32, n_action=8, fc_units=64)
    B, n_state, n_action, fc_units = 8, 32, 8, 64

    key = jax.random.PRNGKey(0)
    k_params, k_state = jax.random.split(key)
    params = init_params(k_params, n_state, n_action, fc_units)
    padded = pad_params(params)          # one-time padding, not on the forward path
    state = jax.random.normal(k_state, (B, n_state), jnp.float32)

    out = actor_forward(state, padded)
    out = jax.block_until_ready(out)

    ref = reference_forward(state, params)
    assert out.shape == (B, n_action)
    # One-pass variance (E[x^2]-mu^2) is marginally less stable than the
    # two-pass reference; bounded tanh output keeps the delta well under 1e-4.
    assert jnp.allclose(out, ref, atol=1e-4, rtol=1e-4), "mismatch vs reference"
    print("KERNEL_OK")
</pallas_src>

<mosaic_0001>
module attributes {stable_mosaic.version = 11 : i64} {
  func.func @actor_kernel(%arg0: memref<8x32xf32, #tpu.memory_space<vmem>>, %arg1: memref<32x128xf32, #tpu.memory_space<vmem>>, %arg2: memref<1x128xf32, #tpu.memory_space<vmem>>, %arg3: memref<1x128xf32, #tpu.memory_space<vmem>>, %arg4: memref<1x128xf32, #tpu.memory_space<vmem>>, %arg5: memref<128x128xf32, #tpu.memory_space<vmem>>, %arg6: memref<1x128xf32, #tpu.memory_space<vmem>>, %arg7: memref<128x128xf32, #tpu.memory_space<vmem>>, %arg8: memref<1x128xf32, #tpu.memory_space<vmem>>, %arg9: memref<8x128xf32, #tpu.memory_space<vmem>>) attributes {dimension_semantics = [], scalar_prefetch = 0 : i64, scratch_operands = 0 : i64, tpu.core_type = #tpu.core_type<tc>} {
    %c0 = arith.constant 0 : index
    %c0_0 = arith.constant 0 : index
    %0 = vector.load %arg0[%c0, %c0_0] : memref<8x32xf32, #tpu.memory_space<vmem>>, vector<8x32xf32>
    %c0_1 = arith.constant 0 : index
    %c0_2 = arith.constant 0 : index
    %1 = vector.load %arg1[%c0_1, %c0_2] : memref<32x128xf32, #tpu.memory_space<vmem>>, vector<32x128xf32>
    %cst = arith.constant dense<0.000000e+00> : vector<8x128xf32>
    %2 = tpu.matmul %0, %1, %cst {dimension_numbers = #tpu.dot_dimension_numbers<[1], [0], [0], [1], [0, 0, 1, 1], [], []>} : vector<8x32xf32>, vector<32x128xf32>, vector<8x128xf32> -> vector<8x128xf32>
    %c0_3 = arith.constant 0 : index
    %c0_4 = arith.constant 0 : index
    %3 = vector.load %arg2[%c0_3, %c0_4] : memref<1x128xf32, #tpu.memory_space<vmem>>, vector<1x128xf32>
    %4 = vector.broadcast %3 : vector<1x128xf32> to vector<8x128xf32>
    %5 = arith.addf %2, %4 : vector<8x128xf32>
    %cst_5 = arith.constant dense<0.000000e+00> : vector<128xf32>
    %6 = vector.multi_reduction <add>, %5, %cst_5 [0] : vector<8x128xf32> to vector<128xf32>
    %7 = vector.shape_cast %6 : vector<128xf32> to vector<1x128xf32>
    %8 = arith.mulf %5, %5 : vector<8x128xf32>
    %cst_6 = arith.constant dense<0.000000e+00> : vector<128xf32>
    %9 = vector.multi_reduction <add>, %8, %cst_6 [0] : vector<8x128xf32> to vector<128xf32>
    %10 = vector.shape_cast %9 : vector<128xf32> to vector<1x128xf32>
    %cst_7 = arith.constant 1.250000e-01 : f32
    %11 = vector.broadcast %cst_7 : f32 to vector<1x128xf32>
    %12 = arith.mulf %7, %11 : vector<1x128xf32>
    %cst_8 = arith.constant 1.250000e-01 : f32
    %13 = vector.broadcast %cst_8 : f32 to vector<1x128xf32>
    %14 = arith.mulf %10, %13 : vector<1x128xf32>
    %15 = arith.mulf %12, %12 : vector<1x128xf32>
    %16 = arith.subf %14, %15 : vector<1x128xf32>
    %cst_9 = arith.constant 9.99999974E-6 : f32
    %17 = vector.broadcast %cst_9 : f32 to vector<1x128xf32>
    %18 = arith.addf %16, %17 : vector<1x128xf32>
    %19 = math.rsqrt %18 : vector<1x128xf32>
    %c0_10 = arith.constant 0 : index
    %c0_11 = arith.constant 0 : index
    %20 = vector.load %arg3[%c0_10, %c0_11] : memref<1x128xf32, #tpu.memory_space<vmem>>, vector<1x128xf32>
    %21 = arith.mulf %19, %20 : vector<1x128xf32>
    %c0_12 = arith.constant 0 : index
    %c0_13 = arith.constant 0 : index
    %22 = vector.load %arg4[%c0_12, %c0_13] : memref<1x128xf32, #tpu.memory_space<vmem>>, vector<1x128xf32>
    %23 = arith.mulf %12, %21 : vector<1x128xf32>
    %24 = arith.subf %22, %23 : vector<1x128xf32>
    %25 = vector.broadcast %21 : vector<1x128xf32> to vector<8x128xf32>
    %26 = arith.mulf %5, %25 : vector<8x128xf32>
    %27 = vector.broadcast %24 : vector<1x128xf32> to vector<8x128xf32>
    %28 = arith.addf %26, %27 : vector<8x128xf32>
    %cst_14 = arith.constant 2.000000e-01 : f32
    %29 = vector.broadcast %cst_14 : f32 to vector<8x128xf32>
    %30 = arith.mulf %29, %28 : vector<8x128xf32>
    %31 = arith.maximumf %28, %30 : vector<8x128xf32>
    %c0_15 = arith.constant 0 : index
    %c0_16 = arith.constant 0 : index
    %32 = vector.load %arg5[%c0_15, %c0_16] : memref<128x128xf32, #tpu.memory_space<vmem>>, vector<128x128xf32>
    %cst_17 = arith.constant dense<0.000000e+00> : vector<8x128xf32>
    %33 = tpu.matmul %31, %32, %cst_17 {dimension_numbers = #tpu.dot_dimension_numbers<[1], [0], [0], [1], [0, 0, 1, 1], [], []>} : vector<8x128xf32>, vector<128x128xf32>, vector<8x128xf32> -> vector<8x128xf32>
    %c0_18 = arith.constant 0 : index
    %c0_19 = arith.constant 0 : index
    %34 = vector.load %arg6[%c0_18, %c0_19] : memref<1x128xf32, #tpu.memory_space<vmem>>, vector<1x128xf32>
    %35 = vector.broadcast %34 : vector<1x128xf32> to vector<8x128xf32>
    %36 = arith.addf %33, %35 : vector<8x128xf32>
    %cst_20 = arith.constant 2.000000e-01 : f32
    %37 = vector.broadcast %cst_20 : f32 to vector<8x128xf32>
    %38 = arith.mulf %37, %36 : vector<8x128xf32>
    %39 = arith.maximumf %36, %38 : vector<8x128xf32>
    %c0_21 = arith.constant 0 : index
    %c0_22 = arith.constant 0 : index
    %40 = vector.load %arg7[%c0_21, %c0_22] : memref<128x128xf32, #tpu.memory_space<vmem>>, vector<128x128xf32>
    %cst_23 = arith.constant dense<0.000000e+00> : vector<8x128xf32>
    %41 = tpu.matmul %39, %40, %cst_23 {dimension_numbers = #tpu.dot_dimension_numbers<[1], [0], [0], [1], [0, 0, 1, 1], [], []>} : vector<8x128xf32>, vector<128x128xf32>, vector<8x128xf32> -> vector<8x128xf32>
    %c0_24 = arith.constant 0 : index
    %c0_25 = arith.constant 0 : index
    %42 = vector.load %arg8[%c0_24, %c0_25] : memref<1x128xf32, #tpu.memory_space<vmem>>, vector<1x128xf32>
    %43 = vector.broadcast %42 : vector<1x128xf32> to vector<8x128xf32>
    %44 = arith.addf %41, %43 : vector<8x128xf32>
    %45 = math.tanh %44 : vector<8x128xf32>
    %c0_26 = arith.constant 0 : index
    %c0_27 = arith.constant 0 : index
    %46 = vector.load %arg9[%c0_26, %c0_27] : memref<8x128xf32, #tpu.memory_space<vmem>>, vector<8x128xf32>
    tpu.vector_store %arg9[%c0_26, %c0_27], %45 {strides = array<i32>} : memref<8x128xf32, #tpu.memory_space<vmem>>, vector<8x128xf32>,
    return
  }
}

</mosaic_0001>

<llo_original>
// kernel: tpu_custom_call.1
$region0: #{tpu_custom_call.1}
  #allocation0 [shape = 'u32[]', space=smem, size = 0x4, offset = 0x4, fixed_abs, tag = 'smem constant byte address 0x4 - core index']
  #allocation1 [shape = 'u32[144,128]{1,0:T(1,128)}', space=vmem, size = 0x12000, scoped, tag = 'internal scratch']
  %s0 = inlined_call_operand.hbm [shape: f32[8,32], index: 0, kind: input, shape index: {}]
  %s1 = inlined_call_operand.hbm [shape: f32[32,128], index: 1, kind: input, shape index: {}]
  %s2 = inlined_call_operand.vmem [shape: f32[1,128], index: 2, kind: input, shape index: {}]
  %s3 = inlined_call_operand.vmem [shape: f32[1,128], index: 3, kind: input, shape index: {}]
  %s4 = inlined_call_operand.vmem [shape: f32[1,128], index: 4, kind: input, shape index: {}]
  %s5 = inlined_call_operand.hbm [shape: f32[128,128], index: 5, kind: input, shape index: {}]
  %s6 = inlined_call_operand.vmem [shape: f32[1,128], index: 6, kind: input, shape index: {}]
  %s7 = inlined_call_operand.hbm [shape: f32[128,128], index: 7, kind: input, shape index: {}]
  %s8 = inlined_call_operand.vmem [shape: f32[1,128], index: 8, kind: input, shape index: {}]
  %s9 = inlined_call_operand.hbm [shape: f32[8,128], index: 9, kind: output, shape index: {}]
  %s10 = sld [smem:[#allocation0]]
  $region62: #{tpu_custom_call.1} parent=0
    _
  %s12 = ssub.s32 1, %s10
  %s13 = scalar_select 0, %s12, %s10
  $region1: #{tpu_custom_call.1} parent=0
    #allocation2 [shape = 'u8[4096]{0}', space=vmem, size = 0x1000, scoped, tag = 'input window, operand 0, single buffered']
    #allocation3 [shape = 's32[1]{0}', space=sflag, size = 0x4, scoped, tag = 'scoped memory for tpu_custom_call.1']
    #allocation4 [shape = 's32[1]{0}', space=sflag, size = 0x4, scoped, tag = 'scoped memory for tpu_custom_call.1']
    #allocation5 [shape = 'u8[16384]{0}', space=vmem, size = 0x4000, scoped, tag = 'input window, operand 1, single buffered']
    #allocation6 [shape = 's32[1]{0}', space=sflag, size = 0x4, scoped, tag = 'scoped memory for tpu_custom_call.1']
    #allocation7 [shape = 'u8[65536]{0}', space=vmem, size = 0x10000, scoped, tag = 'input window, operand 5, single buffered']
    #allocation8 [shape = 'u8[65536]{0}', space=vmem, size = 0x10000, scoped, tag = 'input window, operand 7, single buffered']
    #allocation9 [shape = 's32[1]{0}', space=sflag, size = 0x4, scoped, tag = 'scoped memory for tpu_custom_call.1']
    #allocation10 [shape = 'u8[4096]{0}', space=vmem, size = 0x1000, scoped, tag = 'output window, operand 0, single buffered']
    %14 = vsyncpa [#allocation3], 0
    %15 = vsyncpa [#allocation6], 0
    %16 = vsyncpa [#allocation9], 0
    %17 = vsyncpa [#allocation4], 0
    // Predicated region
    $region2: #{tpu_custom_call.1} parent=1 // pred_check
      _
    $region3: #{tpu_custom_call.1} parent=1 // pred_check_branch
      %19 = sbr.rel (0) target = $region5
    $region4: #{tpu_custom_call.1} parent=1 // pred_region
      %s21 = ssub.s32 128, 128
      %22 = vsyncadd [#allocation3], %s21
      %s24 = sshll.u32 [#allocation2], 4
      %s25 = int_to_ptr.vmem [resolvable:$true] %s24
      %27 = dma.hbm_to_vmem [thread:$0]  %s0, 128, %s25, [#allocation3]
    $region5: #{tpu_custom_call.1} parent=1 // pred_fallthru
      _
    // Predicated region
    $region6: #{tpu_custom_call.1} parent=1 // pred_check
      _
    $region7: #{tpu_custom_call.1} parent=1 // pred_check_branch
      %29 = sbr.rel (0) target = $region9
    $region8: #{tpu_custom_call.1} parent=1 // pred_region
      %s31 = ssub.s32 512, 512
      %32 = vsyncadd [#allocation6], %s31
      %s33 = sshll.u32 [#allocation5], 4
      %s34 = int_to_ptr.vmem [resolvable:$true] %s33
      %39 = dma.hbm_to_vmem [thread:$0]  %s1, 512, %s34, [#allocation6], 128, 128, 8
    $region9: #{tpu_custom_call.1} parent=1 // pred_fallthru
      _
    // Predicated region
    $region10: #{tpu_custom_call.1} parent=1 // pred_check
      _
    $region11: #{tpu_custom_call.1} parent=1 // pred_check_branch
      %41 = sbr.rel (0) target = $region13
    $region12: #{tpu_custom_call.1} parent=1 // pred_region
      _
    $region13: #{tpu_custom_call.1} parent=1 // pred_fallthru
      _
    // Predicated region
    $region14: #{tpu_custom_call.1} parent=1 // pred_check
      _
    $region15: #{tpu_custom_call.1} parent=1 // pred_check_branch
      %43 = sbr.rel (0) target = $region17
    $region16: #{tpu_custom_call.1} parent=1 // pred_region
      _
    $region17: #{tpu_custom_call.1} parent=1 // pred_fallthru
      _
    // Predicated region
    $region18: #{tpu_custom_call.1} parent=1 // pred_check
      _
    $region19: #{tpu_custom_call.1} parent=1 // pred_check_branch
      %45 = sbr.rel (0) target = $region21
    $region20: #{tpu_custom_call.1} parent=1 // pred_region
      _
    $region21: #{tpu_custom_call.1} parent=1 // pred_fallthru
      _
    // Predicated region
    $region22: #{tpu_custom_call.1} parent=1 // pred_check
      _
    $region23: #{tpu_custom_call.1} parent=1 // pred_check_branch
      %47 = sbr.rel (0) target = $region25
    $region24: #{tpu_custom_call.1} parent=1 // pred_region
      %s49 = ssub.s32 2048, 2048
      %50 = vsyncadd [#allocation6], %s49
      %s51 = sshll.u32 [#allocation7], 4
      %s52 = int_to_ptr.vmem [resolvable:$true] %s51
      %57 = dma.hbm_to_vmem [thread:$0]  %s5, 2048, %s52, [#allocation6], 128, 128, 8
    $region25: #{tpu_custom_call.1} parent=1 // pred_fallthru
      _
    // Predicated region
    $region26: #{tpu_custom_call.1} parent=1 // pred_check
      _
    $region27: #{tpu_custom_call.1} parent=1 // pred_check_branch
      %59 = sbr.rel (0) target = $region29
    $region28: #{tpu_custom_call.1} parent=1 // pred_region
      _
    $region29: #{tpu_custom_call.1} parent=1 // pred_fallthru
      _
    // Predicated region
    $region30: #{tpu_custom_call.1} parent=1 // pred_check
      _
    $region31: #{tpu_custom_call.1} parent=1 // pred_check_branch
      %61 = sbr.rel (0) target = $region33
    $region32: #{tpu_custom_call.1} parent=1 // pred_region
      %s63 = ssub.s32 2048, 2048
      %64 = vsyncadd [#allocation9], %s63
      %s65 = sshll.u32 [#allocation8], 4
      %s66 = int_to_ptr.vmem [resolvable:$true] %s65
      %71 = dma.hbm_to_vmem [thread:$0]  %s7, 2048, %s66, [#allocation9], 128, 128, 8
    $region33: #{tpu_custom_call.1} parent=1 // pred_fallthru
      _
    // Predicated region
    $region34: #{tpu_custom_call.1} parent=1 // pred_check
      _
    $region35: #{tpu_custom_call.1} parent=1 // pred_check_branch
      %73 = sbr.rel (0) target = $region37
    $region36: #{tpu_custom_call.1} parent=1 // pred_region
      _
    $region37: #{tpu_custom_call.1} parent=1 // pred_fallthru
      _
    // Predicated region
    $region38: #{tpu_custom_call.1} parent=1 // pred_check
      _
    $region39: #{tpu_custom_call.1} parent=1 // pred_check_branch
      %75 = sbr.rel (0) target = $region41
    $region40: #{tpu_custom_call.1} parent=1 // pred_region
      %76 = dma.done [#allocation3], 128
    $region41: #{tpu_custom_call.1} parent=1 // pred_fallthru
      _
    // Predicated region
    $region42: #{tpu_custom_call.1} parent=1 // pred_check
      _
    $region43: #{tpu_custom_call.1} parent=1 // pred_check_branch
      %78 = sbr.rel (0) target = $region45
    $region44: #{tpu_custom_call.1} parent=1 // pred_region
      %79 = dma.done [#allocation6], 512
    $region45: #{tpu_custom_call.1} parent=1 // pred_fallthru
      _
    // Predicated region
    $region46: #{tpu_custom_call.1} parent=1 // pred_check
      _
    $region47: #{tpu_custom_call.1} parent=1 // pred_check_branch
      %81 = sbr.rel (0) target = $region49
    $region48: #{tpu_custom_call.1} parent=1 // pred_region
      %82 = dma.done [#allocation6], 2048
    $region49: #{tpu_custom_call.1} parent=1 // pred_fallthru
      _
    // Predicated region
    $region50: #{tpu_custom_call.1} parent=1 // pred_check
      _
    $region51: #{tpu_custom_call.1} parent=1 // pred_check_branch
      %84 = sbr.rel (0) target = $region53
    $region52: #{tpu_custom_call.1} parent=1 // pred_region
      %85 = dma.done [#allocation9], 2048
    $region53: #{tpu_custom_call.1} parent=1 // pred_fallthru
      _
    %v86 = vld [vmem:[#allocation2] sm:$0xff]
    %v87 = vld [vmem:[#allocation5] sm:$0xff]
    %v88 = vld [vmem:[#allocation5 + $0x8] sm:$0xff]
    %v89 = vld [vmem:[#allocation5 + $0x10] sm:$0xff]
    %v90 = vld [vmem:[#allocation5 + $0x18] sm:$0xff]
    %v91 = vld [vmem:[%s2] sm:$0x1]
    %v93 = vlaneseq
    %v94 = vshrl.u32 %v93, 7
    %v95 = vsub.s32 0, %v94
    %v96 = vrot.slane %v91, %v95
    %vm98 = vcmask 261120
    %v100 = vsel %vm98, %v86, 0
    %102 = vmatprep.subr.mxu0 0.0
    %103 = vmatpush1.msra.mxu0 0.0
    %104 = vmatprep.subr.mxu0 0.0
    %105 = vmatpush1.msra.mxu0 0.0
    %106 = vmatprep.subr.mxu0 0.0
    %107 = vmatpush1.msra.mxu0 0.0
    %108 = vmatprep.subr.mxu0 0.0
    %109 = vmatpush1.msra.mxu0 0.0
    %110 = vmatprep.subr.mxu0 0.0
    %111 = vmatpush1.msra.mxu0 0.0
    %112 = vmatprep.subr.mxu0 0.0
    %113 = vmatpush1.msra.mxu0 0.0
    %114 = vmatprep.subr.mxu0 0.0
    %115 = vmatpush1.msra.mxu0 0.0
    %116 = vmatprep.subr.mxu0 0.0
    %117 = vmatpush1.msra.mxu0 0.0
    %118 = vmatprep.subr.mxu0 0.0
    %119 = vmatpush1.msra.mxu0 0.0
    %120 = vmatprep.subr.mxu0 0.0
    %121 = vmatpush1.msra.mxu0 0.0
    %122 = vmatprep.subr.mxu0 0.0
    %123 = vmatpush1.msra.mxu0 0.0
    %124 = vmatprep.subr.mxu0 0.0
    %125 = vmatpush1.msra.mxu0 0.0
    %126 = vmatprep.subr.mxu0 0.0
    %127 = vmatpush1.msra.mxu0 %v90
    %128 = vmatprep.subr.mxu0 0.0
    %129 = vmatpush1.msra.mxu0 %v89
    %130 = vmatprep.subr.mxu0 0.0
    %131 = vmatpush1.msra.mxu0 %v88
    %132 = vmatprep.subr.mxu0 0.0
    %133 = vmatpush1.msra.mxu0 %v87
    %134 = vmatprep.subr.mxu0 0.0
    %135 = vmatpush2.msra.mxu0 0.0
    %136 = vmatprep.subr.mxu0 0.0
    %137 = vmatpush2.msra.mxu0 0.0
    %138 = vmatprep.subr.mxu0 0.0
    %139 = vmatpush2.msra.mxu0 0.0
    %140 = vmatprep.subr.mxu0 0.0
    %141 = vmatpush2.msra.mxu0 0.0
    %142 = vmatprep.subr.mxu0 0.0
    %143 = vmatpush2.msra.mxu0 0.0
    %144 = vmatprep.subr.mxu0 0.0
    %145 = vmatpush2.msra.mxu0 0.0
    %146 = vmatprep.subr.mxu0 0.0
    %147 = vmatpush2.msra.mxu0 0.0
    %148 = vmatprep.subr.mxu0 0.0
    %149 = vmatpush2.msra.mxu0 0.0
    %150 = vmatprep.subr.mxu0 0.0
    %151 = vmatpush2.msra.mxu0 0.0
    %152 = vmatprep.subr.mxu0 0.0
    %153 = vmatpush2.msra.mxu0 0.0
    %154 = vmatprep.subr.mxu0 0.0
    %155 = vmatpush2.msra.mxu0 0.0
    %156 = vmatprep.subr.mxu0 0.0
    %157 = vmatpush2.msra.mxu0 0.0
    %158 = vmatprep.subr.mxu0 0.0
    %159 = vmatpush2.msra.mxu0 0.0
    %160 = vmatprep.subr.mxu0 0.0
    %161 = vmatpush2.msra.mxu0 0.0
    %162 = vmatprep.subr.mxu0 0.0
    %163 = vmatpush2.msra.mxu0 0.0
    %164 = vmatprep.subr.mxu0 0.0
    %165 = vmatpush2.msra.mxu0 0.0
    %166 = vmatprep.mubr.f32.mxu0 0.0
    %167 = vmatmul.mubr.f32.gmra.mxu0 %v100
    %v168 = vpop.f32.mrf.mxu0
    %v169 = vadd.f32 %v96, %v168
    %v170 = vpop.f32.mrf.mxu0
    %171 = vdwg.mxu0
    %v172 = vrot.slane %v169, 4
    %v173 = vadd.f32 %v169, %v172
    %v174 = vrot.slane %v173, 2
    %v175 = vadd.f32 %v173, %v174
    %v176 = vrot.slane %v175, 1
    %v177 = vadd.f32 %v175, %v176
    %v178 = vmul.f32 %v169, %v169
    %v179 = vrot.slane %v178, 4
    %v180 = vadd.f32 %v178, %v179
    %v181 = vrot.slane %v180, 2
    %v182 = vadd.f32 %v180, %v181
    %v183 = vrot.slane %v182, 1
    %v184 = vadd.f32 %v182, %v183
    %v185 = vmul.f32 %v177, 0.125
    %v186 = vmul.f32 %v184, 0.125
    %v187 = vmul.f32 %v185, %v185
    %v188 = vsub.f32 %v186, %v187
    %v189 = vadd.f32 %v188, 1e-05
    %v190 = vrsqrt.pop %v189
    %v191 = vld [vmem:[%s3] sm:$0x1]
    %v192 = vmul.f32 %v190, %v191
    %v193 = vld [vmem:[%s4] sm:$0x1]
    %v194 = vmul.f32 %v185, %v192
    %v195 = vsub.f32 %v193, %v194
    %v196 = vlaneseq
    %v197 = vshrl.u32 %v196, 7
    %v198 = vsub.s32 0, %v197
    %v199 = vrot.slane %v192, %v198
    %v200 = vmul.f32 %v169, %v199
    %v202 = vlaneseq
    %v203 = vshrl.u32 %v202, 7
    %v204 = vsub.s32 0, %v203
    %v205 = vrot.slane %v195, %v204
    %v207 = vadd.f32 %v200, %v205
    %v208 = vmul.f32 %v207, 0.2
    %v209 = vmax.f32 %v207, %v208
    %v210 = vld [vmem:[#allocation7] sm:$0xff]
    %v211 = vld [vmem:[#allocation7 + $0x8] sm:$0xff]
    %v212 = vld [vmem:[#allocation7 + $0x10] sm:$0xff]
    %v213 = vld [vmem:[#allocation7 + $0x18] sm:$0xff]
    %v214 = vld [vmem:[#allocation7 + $0x20] sm:$0xff]
    %v215 = vld [vmem:[#allocation7 + $0x28] sm:$0xff]
    %v216 = vld [vmem:[#allocation7 + $0x30] sm:$0xff]
    %v217 = vld [vmem:[#allocation7 + $0x38] sm:$0xff]
    %v218 = vld [vmem:[#allocation7 + $0x40] sm:$0xff]
    %v219 = vld [vmem:[#allocation7 + $0x48] sm:$0xff]
    %v220 = vld [vmem:[#allocation7 + $0x50] sm:$0xff]
    %v221 = vld [vmem:[#allocation7 + $0x58] sm:$0xff]
    %v222 = vld [vmem:[#allocation7 + $0x60] sm:$0xff]
    %v223 = vld [vmem:[#allocation7 + $0x68] sm:$0xff]
    %v224 = vld [vmem:[#allocation7 + $0x70] sm:$0xff]
    %v225 = vld [vmem:[#allocation7 + $0x78] sm:$0xff]
    %v226 = vld [vmem:[%s6] sm:$0x1]
    %v228 = vlaneseq
    %v229 = vshrl.u32 %v228, 7
    %v230 = vsub.s32 0, %v229
    %v231 = vrot.slane %v226, %v230
    %233 = vmatprep.subr.mxu0 0.0
    %234 = vmatpush1.msra.mxu0 %v225
    %235 = vmatprep.subr.mxu0 0.0
    %236 = vmatpush1.msra.mxu0 %v224
    %237 = vmatprep.subr.mxu0 0.0
    %238 = vmatpush1.msra.mxu0 %v223
    %239 = vmatprep.subr.mxu0 0.0
    %240 = vmatpush1.msra.mxu0 %v222
    %241 = vmatprep.subr.mxu0 0.0
    %242 = vmatpush1.msra.mxu0 %v221
    %243 = vmatprep.subr.mxu0 0.0
    %244 = vmatpush1.msra.mxu0 %v220
    %245 = vmatprep.subr.mxu0 0.0
    %246 = vmatpush1.msra.mxu0 %v219
    %247 = vmatprep.subr.mxu0 0.0
    %248 = vmatpush1.msra.mxu0 %v218
    %249 = vmatprep.subr.mxu0 0.0
    %250 = vmatpush1.msra.mxu0 %v217
    %251 = vmatprep.subr.mxu0 0.0
    %252 = vmatpush1.msra.mxu0 %v216
    %253 = vmatprep.subr.mxu0 0.0
    %254 = vmatpush1.msra.mxu0 %v215
    %255 = vmatprep.subr.mxu0 0.0
    %256 = vmatpush1.msra.mxu0 %v214
    %257 = vmatprep.subr.mxu0 0.0
    %258 = vmatpush1.msra.mxu0 %v213
    %259 = vmatprep.subr.mxu0 0.0
    %260 = vmatpush1.msra.mxu0 %v212
    %261 = vmatprep.subr.mxu0 0.0
    %262 = vmatpush1.msra.mxu0 %v211
    %263 = vmatprep.subr.mxu0 0.0
    %264 = vmatpush1.msra.mxu0 %v210
    %265 = vmatprep.subr.mxu0 0.0
    %266 = vmatpush2.msra.mxu0 0.0
    %267 = vmatprep.subr.mxu0 0.0
    %268 = vmatpush2.msra.mxu0 0.0
    %269 = vmatprep.subr.mxu0 0.0
    %270 = vmatpush2.msra.mxu0 0.0
    %271 = vmatprep.subr.mxu0 0.0
    %272 = vmatpush2.msra.mxu0 0.0
    %273 = vmatprep.subr.mxu0 0.0
    %274 = vmatpush2.msra.mxu0 0.0
    %275 = vmatprep.subr.mxu0 0.0
    %276 = vmatpush2.msra.mxu0 0.0
    %277 = vmatprep.subr.mxu0 0.0
    %278 = vmatpush2.msra.mxu0 0.0
    %279 = vmatprep.subr.mxu0 0.0
    %280 = vmatpush2.msra.mxu0 0.0
    %281 = vmatprep.subr.mxu0 0.0
    %282 = vmatpush2.msra.mxu0 0.0
    %283 = vmatprep.subr.mxu0 0.0
    %284 = vmatpush2.msra.mxu0 0.0
    %285 = vmatprep.subr.mxu0 0.0
    %286 = vmatpush2.msra.mxu0 0.0
    %287 = vmatprep.subr.mxu0 0.0
    %288 = vmatpush2.msra.mxu0 0.0
    %289 = vmatprep.subr.mxu0 0.0
    %290 = vmatpush2.msra.mxu0 0.0
    %291 = vmatprep.subr.mxu0 0.0
    %292 = vmatpush2.msra.mxu0 0.0
    %293 = vmatprep.subr.mxu0 0.0
    %294 = vmatpush2.msra.mxu0 0.0
    %295 = vmatprep.subr.mxu0 0.0
    %296 = vmatpush2.msra.mxu0 0.0
    %297 = vmatprep.mubr.f32.mxu0 0.0
    %298 = vmatmul.mubr.f32.gmra.mxu0 %v209
    %v299 = vpop.f32.mrf.mxu0
    %v300 = vadd.f32 %v231, %v299
    %v301 = vpop.f32.mrf.mxu0
    %302 = vdwg.mxu0
    %v303 = vmul.f32 %v300, 0.2
    %v304 = vmax.f32 %v300, %v303
    %v305 = vld [vmem:[#allocation8] sm:$0xff]
    %v306 = vld [vmem:[#allocation8 + $0x8] sm:$0xff]
    %v307 = vld [vmem:[#allocation8 + $0x10] sm:$0xff]
    %v308 = vld [vmem:[#allocation8 + $0x18] sm:$0xff]
    %v309 = vld [vmem:[#allocation8 + $0x20] sm:$0xff]
    %v310 = vld [vmem:[#allocation8 + $0x28] sm:$0xff]
    %v311 = vld [vmem:[#allocation8 + $0x30] sm:$0xff]
    %v312 = vld [vmem:[#allocation8 + $0x38] sm:$0xff]
    %v313 = vld [vmem:[#allocation8 + $0x40] sm:$0xff]
    %v314 = vld [vmem:[#allocation8 + $0x48] sm:$0xff]
    %v315 = vld [vmem:[#allocation8 + $0x50] sm:$0xff]
    %v316 = vld [vmem:[#allocation8 + $0x58] sm:$0xff]
    %v317 = vld [vmem:[#allocation8 + $0x60] sm:$0xff]
    %v318 = vld [vmem:[#allocation8 + $0x68] sm:$0xff]
    %v319 = vld [vmem:[#allocation8 + $0x70] sm:$0xff]
    %v320 = vld [vmem:[#allocation8 + $0x78] sm:$0xff]
    %v321 = vld [vmem:[%s8] sm:$0x1]
    %v323 = vlaneseq
    %v324 = vshrl.u32 %v323, 7
    %v325 = vsub.s32 0, %v324
    %v326 = vrot.slane %v321, %v325
    %328 = vmatprep.subr.mxu0 0.0
    %329 = vmatpush1.msra.mxu0 %v320
    %330 = vmatprep.subr.mxu0 0.0
    %331 = vmatpush1.msra.mxu0 %v319
    %332 = vmatprep.subr.mxu0 0.0
    %333 = vmatpush1.msra.mxu0 %v318
    %334 = vmatprep.subr.mxu0 0.0
    %335 = vmatpush1.msra.mxu0 %v317
    %336 = vmatprep.subr.mxu0 0.0
    %337 = vmatpush1.msra.mxu0 %v316
    %338 = vmatprep.subr.mxu0 0.0
    %339 = vmatpush1.msra.mxu0 %v315
    %340 = vmatprep.subr.mxu0 0.0
    %341 = vmatpush1.msra.mxu0 %v314
    %342 = vmatprep.subr.mxu0 0.0
    %343 = vmatpush1.msra.mxu0 %v313
    %344 = vmatprep.subr.mxu0 0.0
    %345 = vmatpush1.msra.mxu0 %v312
    %346 = vmatprep.subr.mxu0 0.0
    %347 = vmatpush1.msra.mxu0 %v311
    %348 = vmatprep.subr.mxu0 0.0
    %349 = vmatpush1.msra.mxu0 %v310
    %350 = vmatprep.subr.mxu0 0.0
    %351 = vmatpush1.msra.mxu0 %v309
    %352 = vmatprep.subr.mxu0 0.0
    %353 = vmatpush1.msra.mxu0 %v308
    %354 = vmatprep.subr.mxu0 0.0
    %355 = vmatpush1.msra.mxu0 %v307
    %356 = vmatprep.subr.mxu0 0.0
    %357 = vmatpush1.msra.mxu0 %v306
    %358 = vmatprep.subr.mxu0 0.0
    %359 = vmatpush1.msra.mxu0 %v305
    %360 = vmatprep.subr.mxu0 0.0
    %361 = vmatpush2.msra.mxu0 0.0
    %362 = vmatprep.subr.mxu0 0.0
    %363 = vmatpush2.msra.mxu0 0.0
    %364 = vmatprep.subr.mxu0 0.0
    %365 = vmatpush2.msra.mxu0 0.0
    %366 = vmatprep.subr.mxu0 0.0
    %367 = vmatpush2.msra.mxu0 0.0
    %368 = vmatprep.subr.mxu0 0.0
    %369 = vmatpush2.msra.mxu0 0.0
    %370 = vmatprep.subr.mxu0 0.0
    %371 = vmatpush2.msra.mxu0 0.0
    %372 = vmatprep.subr.mxu0 0.0
    %373 = vmatpush2.msra.mxu0 0.0
    %374 = vmatprep.subr.mxu0 0.0
    %375 = vmatpush2.msra.mxu0 0.0
    %376 = vmatprep.subr.mxu0 0.0
    %377 = vmatpush2.msra.mxu0 0.0
    %378 = vmatprep.subr.mxu0 0.0
    %379 = vmatpush2.msra.mxu0 0.0
    %380 = vmatprep.subr.mxu0 0.0
    %381 = vmatpush2.msra.mxu0 0.0
    %382 = vmatprep.subr.mxu0 0.0
    %383 = vmatpush2.msra.mxu0 0.0
    %384 = vmatprep.subr.mxu0 0.0
    %385 = vmatpush2.msra.mxu0 0.0
    %386 = vmatprep.subr.mxu0 0.0
    %387 = vmatpush2.msra.mxu0 0.0
    %388 = vmatprep.subr.mxu0 0.0
    %389 = vmatpush2.msra.mxu0 0.0
    %390 = vmatprep.subr.mxu0 0.0
    %391 = vmatpush2.msra.mxu0 0.0
    %392 = vmatprep.mubr.f32.mxu0 0.0
    %393 = vmatmul.mubr.f32.gmra.mxu0 %v304
    %v394 = vpop.f32.mrf.mxu0
    %v395 = vadd.f32 %v326, %v394
    %v396 = vpop.f32.mrf.mxu0
    %397 = vdwg.mxu0
    %v398 = vtanh.pop %v395
    %399 = vst [vmem:[#allocation10] sm:$0xff] %v398
    // Predicated region
    $region54: #{tpu_custom_call.1} parent=1 // pred_check
      _
    $region55: #{tpu_custom_call.1} parent=1 // pred_check_branch
      %401 = sbr.rel (0) target = $region57
    $region56: #{tpu_custom_call.1} parent=1 // pred_region
      %s403 = ssub.s32 128, 128
      %404 = vsyncadd [#allocation4], %s403
      %s406 = sshll.u32 [#allocation10], 4
      %s407 = int_to_ptr.vmem [resolvable:$true] %s406
      %409 = dma.vmem_to_hbm [thread:$0]  %s407, 128, %s9, [#allocation4]
    $region57: #{tpu_custom_call.1} parent=1 // pred_fallthru
      _
    // Predicated region
    $region58: #{tpu_custom_call.1} parent=1 // pred_check
      _
    $region59: #{tpu_custom_call.1} parent=1 // pred_check_branch
      %411 = sbr.rel (0) target = $region61
    $region60: #{tpu_custom_call.1} parent=1 // pred_region
      %412 = dma.done [#allocation4], 128
    $region61: #{tpu_custom_call.1} parent=1 // pred_fallthru
      _
    %413 = vsyncpa [#allocation3], 1
    %414 = vsyncpa [#allocation6], 1
    %415 = vsyncpa [#allocation9], 1
    %416 = vsyncpa [#allocation4], 1

</llo_original>
